<compile_context>
chip_gen: v5e
topology: v5e:2x2
jax: 0.10.0
libtpu: 0.0.40
codegen_flags: <defaults>
</compile_context>

<pallas_src>
import functools
import math

import jax
import jax.numpy as jnp
from jax.experimental import pallas as pl
from jax.experimental.pallas import tpu as pltpu

LANE = 128            # lane width: node / feature / class dims padded to this
TM_PREF = 512         # preferred output-row tile
TK_PREF_BF16 = 2048   # preferred contraction tile for bf16 A
TK_PREF_F32 = 1024    # smaller f32 contraction tile (v7x has 64 MiB VMEM per TC)


def _round_up(x, m):
    return ((x + m - 1) // m) * m


def _pick_tile(n_pad, pref, min_tiles=1):
    """Largest multiple of LANE <= pref that divides n_pad; optionally ensure
    at least `min_tiles` tiles along the axis (v7x megacore)."""
    cap = min(pref, n_pad)
    if min_tiles > 1 and n_pad >= min_tiles * LANE:
        cap = min(cap, n_pad // min_tiles)
    t = max(LANE, (cap // LANE) * LANE)
    while n_pad % t != 0:
        t -= LANE
    return t


# ----------------------------------------------------------------------------
# Pallas kernels
# ----------------------------------------------------------------------------
def _fused_layer_kernel(a_in_ref, a_out_ref, hk_ref, hi_ref, w_ref, c_ref,
                        b_ref, out_ref, *, has_res_proj):
    """One DirectGCN layer, fully fused:

      out = tanh( c_in * (A_in @ (h @ W_in_eff) + b_in)
                + c_out * (A_out @ (h @ W_out_eff) + b_out)
                + residual )

    Grid = (rows i : parallel, contraction k : arbitrary).  out_ref is resident
    across k (index_map (i, 0)) and serves as the f32 accumulator.
    """
    k = pl.program_id(1)
    f = out_ref.shape[1]

    @pl.when(k == 0)
    def _():
        out_ref[...] = jnp.zeros_like(out_ref)

    # On-the-fly projection of the contraction tile of h (small f32 matmul,
    # hides in the MXU columns left idle by the 128-lane aggregation matmuls).
    p = jnp.dot(hk_ref[...], w_ref[:, :2 * f],
                preferred_element_type=jnp.float32).astype(a_in_ref.dtype)
    c = c_ref[...]                                 # (tm, 2) packed [c_in | c_out]
    out_ref[...] += (
        c[:, 0:1] * jnp.dot(a_in_ref[...], p[:, :f],
                            preferred_element_type=jnp.float32)
        + c[:, 1:2] * jnp.dot(a_out_ref[...], p[:, f:],
                              preferred_element_type=jnp.float32))

    @pl.when(k == pl.num_programs(1) - 1)
    def _():
        b = b_ref[...]                             # (3, F) packed [b_in; b_out; b_res]
        hi = hi_ref[...]                           # (tm, F_in) row tile of h
        if has_res_proj:
            res = jnp.dot(hi, w_ref[:, 2 * f:3 * f],
                          preferred_element_type=jnp.float32) + b[2:3, :]
        else:                                      # identity residual
            res = hi[:, :f]
        out_ref[...] = jnp.tanh(out_ref[...]
                                + c[:, 0:1] * b[0:1, :]
                                + c[:, 1:2] * b[1:2, :]
                                + res)


def _decoder_kernel(h_ref, w_ref, b_ref, logp_ref, emb_ref):
    """decoder_fc + masked log_softmax + L2-normalized embeddings."""
    h = h_ref[...]
    logits = jnp.dot(h, w_ref[...], preferred_element_type=jnp.float32) + b_ref[...]
    m = jnp.max(logits, axis=-1, keepdims=True)
    s = logits - m
    lse = jnp.log(jnp.sum(jnp.exp(s), axis=-1, keepdims=True))
    logp_ref[...] = s - lse
    sumsq = jnp.sum(h * h, axis=-1, keepdims=True)
    emb_ref[...] = h * jax.lax.rsqrt(jnp.maximum(sumsq, 1e-24))


# ----------------------------------------------------------------------------
# pallas_call wrappers
# ----------------------------------------------------------------------------
def _layer(h_pad, a_in_pad, a_out_pad, lp, agg_dtype):
    n_pad = a_in_pad.shape[0]
    f_in_pad, f_out_pad = lp["f_in_pad"], lp["f_out_pad"]
    w_cat = lp["w_cat"]
    wwidth = w_cat.shape[1]

    tm = _pick_tile(n_pad, TM_PREF, min_tiles=2)   # >=2 row tiles for v7x megacore
    tk_pref = TK_PREF_BF16 if agg_dtype == jnp.bfloat16 else TK_PREF_F32
    tk = _pick_tile(n_pad, tk_pref)
    grid = (n_pad // tm, n_pad // tk)

    kernel = functools.partial(_fused_layer_kernel,
                               has_res_proj=lp["has_res_proj"])
    in_specs = [
        pl.BlockSpec((tm, tk), lambda i, k: (i, k)),            # A_in tile
        pl.BlockSpec((tm, tk), lambda i, k: (i, k)),            # A_out tile
        pl.BlockSpec((tk, f_in_pad), lambda i, k: (k, 0)),      # h contraction tile
        pl.BlockSpec((tm, f_in_pad), lambda i, k: (i, 0)),      # h row tile (residual)
        pl.BlockSpec((f_in_pad, wwidth), lambda i, k: (0, 0)),  # fused weight slab
        pl.BlockSpec((tm, 2), lambda i, k: (i, 0)),             # [c_in | c_out]
        pl.BlockSpec((3, f_out_pad), lambda i, k: (0, 0)),      # packed biases
    ]
    out_specs = pl.BlockSpec((tm, f_out_pad), lambda i, k: (i, 0))
    return pl.pallas_call(
        kernel,
        out_shape=jax.ShapeDtypeStruct((n_pad, f_out_pad), jnp.float32),
        grid=grid, in_specs=in_specs, out_specs=out_specs,
        compiler_params=pltpu.CompilerParams(
            dimension_semantics=("parallel", "arbitrary"),
            # ~14 MiB of buffers at the largest bf16 config -> safe headroom on
            # v7x (64 MiB physical VMEM) as well as v5e/v6e (128 MiB).
            vmem_limit_bytes=32 * 1024 * 1024),
    )(a_in_pad, a_out_pad, h_pad, h_pad, w_cat, lp["c2"], lp["b3"])


def _decode(h_pad, w_dec_pad, b_dec_pad):
    n_pad, f_pad = h_pad.shape
    c_pad = w_dec_pad.shape[1]
    tm = _pick_tile(n_pad, TM_PREF, min_tiles=2)
    grid = (n_pad // tm,)
    in_specs = [pl.BlockSpec((tm, f_pad), lambda i: (i, 0)),
                pl.BlockSpec((f_pad, c_pad), lambda i: (0, 0)),
                pl.BlockSpec((1, c_pad), lambda i: (0, 0))]
    out_shape = (jax.ShapeDtypeStruct((n_pad, c_pad), jnp.float32),
                 jax.ShapeDtypeStruct((n_pad, f_pad), jnp.float32))
    out_specs = (pl.BlockSpec((tm, c_pad), lambda i: (i, 0)),
                 pl.BlockSpec((tm, f_pad), lambda i: (i, 0)))
    return pl.pallas_call(_decoder_kernel, out_shape=out_shape, grid=grid,
                          in_specs=in_specs, out_specs=out_specs,
                          compiler_params=pltpu.CompilerParams(
                              dimension_semantics=("parallel",))
                          )(h_pad, w_dec_pad, b_dec_pad)


# ----------------------------------------------------------------------------
# Parameter init (torch-faithful), fusion / padding, glue
# ----------------------------------------------------------------------------
def _xavier_uniform(key, f_in, f_out):
    bound = math.sqrt(6.0 / (f_in + f_out))
    return jax.random.uniform(key, (f_in, f_out), jnp.float32, -bound, bound)


def _linear_default(key, f_in, f_out):
    kw, kb = jax.random.split(key)
    bound = 1.0 / math.sqrt(f_in)
    w = jax.random.uniform(kw, (f_in, f_out), jnp.float32, -bound, bound)
    b = jax.random.uniform(kb, (1, f_out), jnp.float32, -bound, bound)
    return w, b


def init_params(key, layer_dims, num_nodes, num_classes, one_gram_dim, max_pe_len):
    params = {"layers": []}
    key, kpe = jax.random.split(key)
    params["pe"] = (jax.random.normal(kpe, (max_pe_len, one_gram_dim), jnp.float32)
                    if one_gram_dim > 0 and max_pe_len > 0 else None)
    for i in range(len(layer_dims) - 1):
        f_in, f_out = layer_dims[i], layer_dims[i + 1]
        key, k1, k2, k3, kres = jax.random.split(key, 5)
        lp = {
            "w_mi": _xavier_uniform(k1, f_in, f_out),
            "w_mo": _xavier_uniform(k2, f_in, f_out),
            "w_sh": _xavier_uniform(k3, f_in, f_out),
            "b_mi": jnp.zeros((1, f_out), jnp.float32),
            "b_mo": jnp.zeros((1, f_out), jnp.float32),
            "b_si": jnp.zeros((1, f_out), jnp.float32),
            "b_so": jnp.zeros((1, f_out), jnp.float32),
            "c_in": jnp.ones((num_nodes, 1), jnp.float32),   # C_in_vec
            "c_out": jnp.ones((num_nodes, 1), jnp.float32),  # C_out_vec
        }
        if f_in != f_out:
            lp["w_res"], lp["b_res"] = _linear_default(kres, f_in, f_out)
        else:                                   # nn.Identity residual
            lp["w_res"], lp["b_res"] = None, None
        params["layers"].append(lp)
    key, kdec = jax.random.split(key)
    params["w_dec"], params["b_dec"] = _linear_default(kdec, layer_dims[-1], num_classes)
    return params


def _pad2(a, rows, cols):
    out = jnp.zeros((rows, cols), a.dtype)
    return out.at[:a.shape[0], :a.shape[1]].set(a)


def fuse_and_pad_params(params, num_nodes, agg_dtype=jnp.bfloat16):
    """One-time host-side fusion: pre-sum shared weights/biases, concat, pad.

    bf16 A / projected-feature matmul inputs are the production default on all
    TPU generations (f32 accumulation & epilogue); pass agg_dtype=jnp.float32
    for bit-faithful checks.
    """
    n_pad = _round_up(max(num_nodes, 1), LANE)    # lane-width padding only
    fused = {"pe": params["pe"], "layers": [], "n_pad": n_pad, "agg_dtype": agg_dtype}
    for lp in params["layers"]:
        f_in, f_out = lp["w_mi"].shape
        f_in_pad, f_out_pad = _round_up(f_in, LANE), _round_up(f_out, LANE)
        w_in_eff = lp["w_mi"] + lp["w_sh"]   # A@(x@Wmi)+A@(x@Wsh) == A@(x@(Wmi+Wsh))
        w_out_eff = lp["w_mo"] + lp["w_sh"]
        has_res_proj = lp["w_res"] is not None
        blocks = [_pad2(w_in_eff, f_in_pad, f_out_pad),
                  _pad2(w_out_eff, f_in_pad, f_out_pad)]
        if has_res_proj:
            blocks.append(_pad2(lp["w_res"], f_in_pad, f_out_pad))
        w_cat = jnp.concatenate(blocks, axis=1)   # stays f32; resident in VMEM
        b_in = lp["b_mi"] + lp["b_si"]
        b_out = lp["b_mo"] + lp["b_so"]
        b_res = lp["b_res"] if has_res_proj else jnp.zeros_like(b_in)
        b3 = jnp.concatenate([_pad2(b_in, 1, f_out_pad),
                              _pad2(b_out, 1, f_out_pad),
                              _pad2(b_res, 1, f_out_pad)], axis=0)
        c2 = jnp.concatenate([_pad2(lp["c_in"], n_pad, 1),
                              _pad2(lp["c_out"], n_pad, 1)], axis=1)
        fused["layers"].append({"w_cat": w_cat, "b3": b3, "c2": c2,
                                "f_in_pad": f_in_pad, "f_out_pad": f_out_pad,
                                "has_res_proj": has_res_proj})
    f_last, n_cls = params["w_dec"].shape
    f_last_pad, c_pad = _round_up(f_last, LANE), _round_up(n_cls, LANE)
    fused["w_dec"] = _pad2(params["w_dec"], f_last_pad, c_pad)
    b_dec = jnp.full((1, c_pad), -1e30, jnp.float32)     # mask padded classes
    fused["b_dec"] = b_dec.at[:, :n_cls].set(params["b_dec"][0])
    fused["num_classes"] = n_cls
    fused["f_last"] = f_last
    return fused


def pad_and_cast_adj(a, n_pad, dtype):
    n = a.shape[0]
    return jnp.zeros((n_pad, n_pad), dtype).at[:n, :n].set(a.astype(dtype))


def apply_pe(x, pe_table, n_gram_len, one_gram_dim):
    # Faithful to torch: silently returns x unchanged if the feature dim does
    # not match n_gram_len*one_gram_dim (the torch module does the same).
    if pe_table is None or n_gram_len == 0 or one_gram_dim == 0:
        return x
    n, f = x.shape
    expected = n_gram_len * one_gram_dim
    if f != expected:
        return x
    pos = min(n_gram_len, pe_table.shape[0])
    xr = x.reshape(n, n_gram_len, one_gram_dim)
    xr = xr.at[:, :pos, :].add(pe_table[:pos][None])
    return xr.reshape(n, expected)


def forward(fused, x, a_in_pad, a_out_pad, n_gram_len, one_gram_dim):
    n = x.shape[0]
    n_pad = fused["n_pad"]
    agg_dtype = fused["agg_dtype"]
    h = apply_pe(x, fused["pe"], n_gram_len, one_gram_dim)
    h = _pad2(h, n_pad, fused["layers"][0]["f_in_pad"])
    for lp in fused["layers"]:
        h = _layer(h, a_in_pad, a_out_pad, lp, agg_dtype)
        # TODO(synk): F.dropout omitted (deterministic / eval-mode forward).
    logp_pad, emb_pad = _decode(h, fused["w_dec"], fused["b_dec"])
    return (logp_pad[:n, :fused["num_classes"]], emb_pad[:n, :fused["f_last"]])


# Pure-JAX reference (faithful to the PyTorch module) for correctness checks.
def forward_ref(params, x, a_in, a_out, n_gram_len, one_gram_dim):
    h = apply_pe(x, params["pe"], n_gram_len, one_gram_dim)
    for lp in params["layers"]:
        xw_mi, xw_mo, xw_sh = h @ lp["w_mi"], h @ lp["w_mo"], h @ lp["w_sh"]
        ic = a_in @ xw_mi + lp["b_mi"] + (a_in @ xw_sh + lp["b_si"])
        oc = a_out @ xw_mo + lp["b_mo"] + (a_out @ xw_sh + lp["b_so"])
        layer_out = lp["c_in"] * ic + lp["c_out"] * oc
        res = h if lp["w_res"] is None else h @ lp["w_res"] + lp["b_res"]
        h = jnp.tanh(layer_out + res)
    logits = h @ params["w_dec"] + params["b_dec"]
    logp = jax.nn.log_softmax(logits, axis=-1)
    emb = h / jnp.maximum(jnp.sqrt(jnp.sum(h * h, -1, keepdims=True)), 1e-12)
    return logp, emb


# ----------------------------------------------------------------------------
if __name__ == "__main__":
    N = 16                       # num_graph_nodes
    n_gram_len, one_gram_dim, max_pe_len = 3, 4, 4
    layer_dims = [n_gram_len * one_gram_dim, 32, 32, 16]   # 12 -> 32 -> 32 -> 16
    num_classes = 8
    E = 48                       # directed edges per direction

    key = jax.random.PRNGKey(0)
    (k_si, k_di, k_wi, k_so, k_do, k_wo, k_x, k_p) = jax.random.split(key, 8)

    src_in = jax.random.randint(k_si, (E,), 0, N)
    dst_in = jax.random.randint(k_di, (E,), 0, N)
    w_in = jax.random.uniform(k_wi, (E,), jnp.float32)
    src_out = jax.random.randint(k_so, (E,), 0, N)
    dst_out = jax.random.randint(k_do, (E,), 0, N)
    w_out = jax.random.uniform(k_wo, (E,), jnp.float32)

    a_in = jnp.zeros((N, N), jnp.float32).at[dst_in, src_in].add(w_in)
    a_out = jnp.zeros((N, N), jnp.float32).at[dst_out, src_out].add(w_out)

    x = jax.random.normal(k_x, (N, layer_dims[0]), jnp.float32)
    params = init_params(k_p, layer_dims, N, num_classes, one_gram_dim, max_pe_len)

    ref_logp, ref_emb = forward_ref(params, x, a_in, a_out, n_gram_len, one_gram_dim)

    # --- Production default: bf16 matmul inputs, f32 accumulation/epilogue ---
    fusedbf = fuse_and_pad_params(params, N)               # agg_dtype=bf16 default
    n_pad = fusedbf["n_pad"]
    a_inbf = pad_and_cast_adj(a_in, n_pad, jnp.bfloat16)
    a_outbf = pad_and_cast_adj(a_out, n_pad, jnp.bfloat16)
    logp_bf, emb_bf = forward(fusedbf, x, a_inbf, a_outbf, n_gram_len, one_gram_dim)
    jax.block_until_ready((logp_bf, emb_bf))
    assert logp_bf.shape == (N, num_classes) and emb_bf.shape == (N, layer_dims[-1])
    assert bool(jnp.all(jnp.isfinite(logp_bf))) and bool(jnp.all(jnp.isfinite(emb_bf)))
    assert jnp.allclose(logp_bf, ref_logp, atol=2e-1, rtol=2e-1)
    assert jnp.allclose(emb_bf, ref_emb, atol=2e-1, rtol=2e-1)

    # --- f32 path: numerically faithful to the torch module (tight check) ----
    fused32 = fuse_and_pad_params(params, N, agg_dtype=jnp.float32)
    a_in32 = pad_and_cast_adj(a_in, n_pad, jnp.float32)
    a_out32 = pad_and_cast_adj(a_out, n_pad, jnp.float32)
    logp, emb = forward(fused32, x, a_in32, a_out32, n_gram_len, one_gram_dim)
    jax.block_until_ready((logp, emb))
    assert jnp.allclose(logp, ref_logp, atol=1e-3, rtol=1e-3)
    assert jnp.allclose(emb, ref_emb, atol=1e-3, rtol=1e-3)

    print("KERNEL_OK")
</pallas_src>

<mosaic_0001>
module attributes {stable_mosaic.version = 11 : i64} {
  func.func @_fused_layer_kernel(%arg0: i32, %arg1: i32, %arg2: memref<128x128xbf16, #tpu.memory_space<vmem>>, %arg3: memref<128x128xbf16, #tpu.memory_space<vmem>>, %arg4: memref<128x128xf32, #tpu.memory_space<vmem>>, %arg5: memref<128x128xf32, #tpu.memory_space<vmem>>, %arg6: memref<128x384xf32, #tpu.memory_space<vmem>>, %arg7: memref<128x2xf32, #tpu.memory_space<vmem>>, %arg8: memref<3x128xf32, #tpu.memory_space<vmem>>, %arg9: memref<128x128xf32, #tpu.memory_space<vmem>>) attributes {dimension_semantics = [#tpu.dimension_semantics<parallel>, #tpu.dimension_semantics<arbitrary>], iteration_bounds = array<i64: 1, 1>, scalar_prefetch = 0 : i64, scratch_operands = 0 : i64, tpu.core_type = #tpu.core_type<tc>, window_params = [{transform_indices = @transform_0, window_bounds = array<i64: 128, 128>}, {transform_indices = @transform_1, window_bounds = array<i64: 128, 128>}, {transform_indices = @transform_2, window_bounds = array<i64: 128, 128>}, {transform_indices = @transform_3, window_bounds = array<i64: 128, 128>}, {pipeline_mode = #tpu.pipeline_mode<synchronous>, transform_indices = @transform_4, window_bounds = array<i64: 128, 384>}, {transform_indices = @transform_5, window_bounds = array<i64: 128, 2>}, {pipeline_mode = #tpu.pipeline_mode<synchronous>, transform_indices = @transform_6, window_bounds = array<i64: 3, 128>}, {transform_indices = @transform_7, window_bounds = array<i64: 128, 128>}]} {
    %c0_i32 = arith.constant 0 : i32
    %0 = arith.cmpi eq, %arg1, %c0_i32 : i32
    %1 = arith.extui %0 : i1 to i32
    %c0_i32_0 = arith.constant 0 : i32
    %2 = arith.cmpi ne, %1, %c0_i32_0 : i32
    scf.if %2 {
      %cst_18 = arith.constant 0.000000e+00 : f32
      %27 = vector.broadcast %cst_18 : f32 to vector<128x128xf32>
      %c0_19 = arith.constant 0 : index
      %c0_20 = arith.constant 0 : index
      %28 = vector.load %arg9[%c0_19, %c0_20] : memref<128x128xf32, #tpu.memory_space<vmem>>, vector<128x128xf32>
      tpu.vector_store %arg9[%c0_19, %c0_20], %27 {strides = array<i32>} : memref<128x128xf32, #tpu.memory_space<vmem>>, vector<128x128xf32>,
    } else {
    }
    %c0 = arith.constant 0 : index
    %c0_1 = arith.constant 0 : index
    %3 = vector.load %arg4[%c0, %c0_1] : memref<128x128xf32, #tpu.memory_space<vmem>>, vector<128x128xf32>
    %c0_2 = arith.constant 0 : index
    %c0_3 = arith.constant 0 : index
    %4 = vector.load %arg6[%c0_2, %c0_3] : memref<128x384xf32, #tpu.memory_space<vmem>>, vector<128x256xf32>
    %cst = arith.constant dense<0.000000e+00> : vector<128x256xf32>
    %5 = tpu.matmul %3, %4, %cst {dimension_numbers = #tpu.dot_dimension_numbers<[1], [0], [0], [1], [0, 0, 1, 1], [], []>} : vector<128x128xf32>, vector<128x256xf32>, vector<128x256xf32> -> vector<128x256xf32>
    %6 = arith.truncf %5 : vector<128x256xf32> to vector<128x256xbf16>
    %c0_4 = arith.constant 0 : index
    %c0_5 = arith.constant 0 : index
    %7 = vector.load %arg7[%c0_4, %c0_5] : memref<128x2xf32, #tpu.memory_space<vmem>>, vector<128x2xf32>
    %c0_6 = arith.constant 0 : index
    %c0_7 = arith.constant 0 : index
    %8 = vector.load %arg9[%c0_6, %c0_7] : memref<128x128xf32, #tpu.memory_space<vmem>>, vector<128x128xf32>
    %9 = vector.extract_strided_slice %7 {offsets = [0, 0], sizes = [128, 1], strides = [1, 1]} : vector<128x2xf32> to vector<128x1xf32>
    %c0_8 = arith.constant 0 : index
    %c0_9 = arith.constant 0 : index
    %10 = vector.load %arg2[%c0_8, %c0_9] : memref<128x128xbf16, #tpu.memory_space<vmem>>, vector<128x128xbf16>
    %11 = vector.extract_strided_slice %6 {offsets = [0, 0], sizes = [128, 128], strides = [1, 1]} : vector<128x256xbf16> to vector<128x128xbf16>
    %cst_10 = arith.constant dense<0.000000e+00> : vector<128x128xf32>
    %12 = tpu.matmul %10, %11, %cst_10 {dimension_numbers = #tpu.dot_dimension_numbers<[1], [0], [0], [1], [0, 0, 1, 1], [], []>} : vector<128x128xbf16>, vector<128x128xbf16>, vector<128x128xf32> -> vector<128x128xf32>
    %13 = vector.broadcast %9 : vector<128x1xf32> to vector<128x128xf32>
    %14 = arith.mulf %13, %12 : vector<128x128xf32>
    %15 = vector.extract_strided_slice %7 {offsets = [0, 1], sizes = [128, 1], strides = [1, 1]} : vector<128x2xf32> to vector<128x1xf32>
    %c0_11 = arith.constant 0 : index
    %c0_12 = arith.constant 0 : index
    %16 = vector.load %arg3[%c0_11, %c0_12] : memref<128x128xbf16, #tpu.memory_space<vmem>>, vector<128x128xbf16>
    %17 = vector.extract_strided_slice %6 {offsets = [0, 128], sizes = [128, 128], strides = [1, 1]} : vector<128x256xbf16> to vector<128x128xbf16>
    %cst_13 = arith.constant dense<0.000000e+00> : vector<128x128xf32>
    %18 = tpu.matmul %16, %17, %cst_13 {dimension_numbers = #tpu.dot_dimension_numbers<[1], [0], [0], [1], [0, 0, 1, 1], [], []>} : vector<128x128xbf16>, vector<128x128xbf16>, vector<128x128xf32> -> vector<128x128xf32>
    %19 = vector.broadcast %15 : vector<128x1xf32> to vector<128x128xf32>
    %20 = arith.mulf %19, %18 : vector<128x128xf32>
    %21 = arith.addf %14, %20 : vector<128x128xf32>
    %22 = arith.addf %8, %21 : vector<128x128xf32>
    %c0_14 = arith.constant 0 : index
    %c0_15 = arith.constant 0 : index
    %23 = vector.load %arg9[%c0_14, %c0_15] : memref<128x128xf32, #tpu.memory_space<vmem>>, vector<128x128xf32>
    tpu.vector_store %arg9[%c0_14, %c0_15], %22 {strides = array<i32>} : memref<128x128xf32, #tpu.memory_space<vmem>>, vector<128x128xf32>,
    %c0_i32_16 = arith.constant 0 : i32
    %24 = arith.cmpi eq, %arg1, %c0_i32_16 : i32
    %25 = arith.extui %24 : i1 to i32
    %c0_i32_17 = arith.constant 0 : i32
    %26 = arith.cmpi ne, %25, %c0_i32_17 : i32
    scf.if %26 {
      %c0_18 = arith.constant 0 : index
      %c0_19 = arith.constant 0 : index
      %27 = vector.load %arg8[%c0_18, %c0_19] : memref<3x128xf32, #tpu.memory_space<vmem>>, vector<3x128xf32>
      %c0_20 = arith.constant 0 : index
      %c0_21 = arith.constant 0 : index
      %28 = vector.load %arg5[%c0_20, %c0_21] : memref<128x128xf32, #tpu.memory_space<vmem>>, vector<128x128xf32>
      %c0_22 = arith.constant 0 : index
      %c256 = arith.constant 256 : index
      %29 = vector.load %arg6[%c0_22, %c256] : memref<128x384xf32, #tpu.memory_space<vmem>>, vector<128x128xf32>
      %cst_23 = arith.constant dense<0.000000e+00> : vector<128x128xf32>
      %30 = tpu.matmul %28, %29, %cst_23 {dimension_numbers = #tpu.dot_dimension_numbers<[1], [0], [0], [1], [0, 0, 1, 1], [], []>} : vector<128x128xf32>, vector<128x128xf32>, vector<128x128xf32> -> vector<128x128xf32>
      %31 = vector.extract_strided_slice %27 {offsets = [2, 0], sizes = [1, 128], strides = [1, 1]} : vector<3x128xf32> to vector<1x128xf32>
      %32 = vector.broadcast %31 : vector<1x128xf32> to vector<128x128xf32>
      %33 = arith.addf %30, %32 : vector<128x128xf32>
      %c0_24 = arith.constant 0 : index
      %c0_25 = arith.constant 0 : index
      %34 = vector.load %arg9[%c0_24, %c0_25] : memref<128x128xf32, #tpu.memory_space<vmem>>, vector<128x128xf32>
      %35 = vector.extract_strided_slice %7 {offsets = [0, 0], sizes = [128, 1], strides = [1, 1]} : vector<128x2xf32> to vector<128x1xf32>
      %36 = vector.extract_strided_slice %27 {offsets = [0, 0], sizes = [1, 128], strides = [1, 1]} : vector<3x128xf32> to vector<1x128xf32>
      %37 = vector.broadcast %35 : vector<128x1xf32> to vector<128x128xf32>
      %38 = vector.broadcast %36 : vector<1x128xf32> to vector<128x128xf32>
      %39 = arith.mulf %37, %38 : vector<128x128xf32>
      %40 = arith.addf %34, %39 : vector<128x128xf32>
      %41 = vector.extract_strided_slice %7 {offsets = [0, 1], sizes = [128, 1], strides = [1, 1]} : vector<128x2xf32> to vector<128x1xf32>
      %42 = vector.extract_strided_slice %27 {offsets = [1, 0], sizes = [1, 128], strides = [1, 1]} : vector<3x128xf32> to vector<1x128xf32>
      %43 = vector.broadcast %41 : vector<128x1xf32> to vector<128x128xf32>
      %44 = vector.broadcast %42 : vector<1x128xf32> to vector<128x128xf32>
      %45 = arith.mulf %43, %44 : vector<128x128xf32>
      %46 = arith.addf %40, %45 : vector<128x128xf32>
      %47 = arith.addf %46, %33 : vector<128x128xf32>
      %48 = math.tanh %47 : vector<128x128xf32>
      %c0_26 = arith.constant 0 : index
      %c0_27 = arith.constant 0 : index
      %49 = vector.load %arg9[%c0_26, %c0_27] : memref<128x128xf32, #tpu.memory_space<vmem>>, vector<128x128xf32>
      tpu.vector_store %arg9[%c0_26, %c0_27], %48 {strides = array<i32>} : memref<128x128xf32, #tpu.memory_space<vmem>>, vector<128x128xf32>,
    } else {
    }
    return
  }
  func.func @transform_0(%arg0: i32, %arg1: i32) -> (i32, i32) {
    %c0_i32 = arith.constant 0 : i32
    return %arg0, %arg1 : i32, i32
  }
  func.func @transform_1(%arg0: i32, %arg1: i32) -> (i32, i32) {
    %c0_i32 = arith.constant 0 : i32
    return %arg0, %arg1 : i32, i32
  }
  func.func @transform_2(%arg0: i32, %arg1: i32) -> (i32, i32) {
    %c0_i32 = arith.constant 0 : i32
    %c0_i32_0 = arith.constant 0 : i32
    return %arg1, %c0_i32 : i32, i32
  }
  func.func @transform_3(%arg0: i32, %arg1: i32) -> (i32, i32) {
    %c0_i32 = arith.constant 0 : i32
    %c0_i32_0 = arith.constant 0 : i32
    return %arg0, %c0_i32 : i32, i32
  }
  func.func @transform_4(%arg0: i32, %arg1: i32) -> (i32, i32) {
    %c0_i32 = arith.constant 0 : i32
    %c0_i32_0 = arith.constant 0 : i32
    %c0_i32_1 = arith.constant 0 : i32
    return %c0_i32, %c0_i32_0 : i32, i32
  }
  func.func @transform_5(%arg0: i32, %arg1: i32) -> (i32, i32) {
    %c0_i32 = arith.constant 0 : i32
    %c0_i32_0 = arith.constant 0 : i32
    return %arg0, %c0_i32 : i32, i32
  }
  func.func @transform_6(%arg0: i32, %arg1: i32) -> (i32, i32) {
    %c0_i32 = arith.constant 0 : i32
    %c0_i32_0 = arith.constant 0 : i32
    %c0_i32_1 = arith.constant 0 : i32
    return %c0_i32, %c0_i32_0 : i32, i32
  }
  func.func @transform_7(%arg0: i32, %arg1: i32) -> (i32, i32) {
    %c0_i32 = arith.constant 0 : i32
    %c0_i32_0 = arith.constant 0 : i32
    return %arg0, %c0_i32 : i32, i32
  }
}

</mosaic_0001>

<llo_original>
// kernel: tpu_custom_call.1
$region0: #{tpu_custom_call.1}
  #allocation0 [shape = 'u32[]', space=smem, size = 0x4, offset = 0x4, fixed_abs, tag = 'smem constant byte address 0x4 - core index']
  #allocation1 [shape = 'u32[72,128]{1,0:T(1,128)}', space=vmem, size = 0x9000, scoped, tag = 'internal scratch']
  %s0 = inlined_call_operand.hbm [shape: bf16[128,128], index: 0, kind: input, shape index: {}]
  %s1 = inlined_call_operand.hbm [shape: bf16[128,128], index: 1, kind: input, shape index: {}]
  %s2 = inlined_call_operand.vmem [shape: f32[128,128], index: 2, kind: input, shape index: {}]
  %s3 = inlined_call_operand.hbm [shape: f32[128,128], index: 3, kind: input, shape index: {}]
  %s4 = inlined_call_operand.hbm [shape: f32[128,384], index: 4, kind: input, shape index: {}]
  %s5 = inlined_call_operand.vmem [shape: f32[128,2], index: 5, kind: input, shape index: {}]
  %s6 = inlined_call_operand.hbm [shape: f32[3,128], index: 6, kind: input, shape index: {}]
  %s7 = inlined_call_operand.hbm [shape: f32[128,128], index: 7, kind: output, shape index: {}]
  %s8 = sld [smem:[#allocation0]]
  $region66: #{tpu_custom_call.1} parent=0
    _
  %s10 = ssub.s32 1, %s8
  %s11 = scalar_select 0, %s10, %s8
  $region1: #{tpu_custom_call.1} parent=0
    #allocation2 [shape = 'u8[32768]{0}', space=vmem, size = 0x8000, scoped, tag = 'input window, operand 0, single buffered']
    #allocation3 [shape = 's32[1]{0}', space=sflag, size = 0x4, scoped, tag = 'scoped memory for tpu_custom_call.1']
    #allocation4 [shape = 's32[1]{0}', space=sflag, size = 0x4, scoped, tag = 'scoped memory for tpu_custom_call.1']
    #allocation5 [shape = 'u8[32768]{0}', space=vmem, size = 0x8000, scoped, tag = 'input window, operand 1, single buffered']
    #allocation6 [shape = 's32[1]{0}', space=sflag, size = 0x4, scoped, tag = 'scoped memory for tpu_custom_call.1']
    #allocation7 [shape = 'u8[65536]{0}', space=vmem, size = 0x10000, scoped, tag = 'input window, operand 3, single buffered']
    #allocation8 [shape = 'u8[196608]{0}', space=vmem, size = 0x30000, scoped, tag = 'input window, operand 4, single buffered']
    #allocation9 [shape = 's32[1]{0}', space=sflag, size = 0x4, scoped, tag = 'scoped memory for tpu_custom_call.1']
    #allocation10 [shape = 'u8[2048]{0}', space=vmem, size = 0x800, scoped, tag = 'input window, operand 6, single buffered']
    #allocation11 [shape = 'u8[65536]{0}', space=vmem, size = 0x10000, scoped, tag = 'output window, operand 0, single buffered']
    %12 = vsyncpa [#allocation3], 0
    %13 = vsyncpa [#allocation6], 0
    %14 = vsyncpa [#allocation9], 0
    %15 = vsyncpa [#allocation4], 0
    // Predicated region
    $region2: #{tpu_custom_call.1} parent=1 // pred_check
      _
    $region3: #{tpu_custom_call.1} parent=1 // pred_check_branch
      %17 = sbr.rel (0) target = $region5
    $region4: #{tpu_custom_call.1} parent=1 // pred_region
      %19 = vsyncadd [#allocation3], 0
      %s20 = sshll.u32 %s0, 4
      %s21 = int_to_ptr.hbm [resolvable:$true] %s20
      %s22 = sshll.u32 [#allocation2], 4
      %s23 = int_to_ptr.vmem [resolvable:$true] %s22
      %28 = dma.hbm_to_vmem [thread:$0]  %s21, 1024, %s23, [#allocation3], 64, 64, 4
    $region5: #{tpu_custom_call.1} parent=1 // pred_fallthru
      _
    // Predicated region
    $region6: #{tpu_custom_call.1} parent=1 // pred_check
      _
    $region7: #{tpu_custom_call.1} parent=1 // pred_check_branch
      %30 = sbr.rel (0) target = $region9
    $region8: #{tpu_custom_call.1} parent=1 // pred_region
      %32 = vsyncadd [#allocation6], 0
      %s33 = sshll.u32 %s1, 4
      %s34 = int_to_ptr.hbm [resolvable:$true] %s33
      %s35 = sshll.u32 [#allocation5], 4
      %s36 = int_to_ptr.vmem [resolvable:$true] %s35
      %41 = dma.hbm_to_vmem [thread:$0]  %s34, 1024, %s36, [#allocation6], 64, 64, 4
    $region9: #{tpu_custom_call.1} parent=1 // pred_fallthru
      _
    // Predicated region
    $region10: #{tpu_custom_call.1} parent=1 // pred_check
      _
    $region11: #{tpu_custom_call.1} parent=1 // pred_check_branch
      %43 = sbr.rel (0) target = $region13
    $region12: #{tpu_custom_call.1} parent=1 // pred_region
      _
    $region13: #{tpu_custom_call.1} parent=1 // pred_fallthru
      _
    // Predicated region
    $region14: #{tpu_custom_call.1} parent=1 // pred_check
      _
    $region15: #{tpu_custom_call.1} parent=1 // pred_check_branch
      %45 = sbr.rel (0) target = $region17
    $region16: #{tpu_custom_call.1} parent=1 // pred_region
      %47 = vsyncadd [#allocation6], 0
      %s48 = sshll.u32 %s3, 4
      %s49 = int_to_ptr.hbm [resolvable:$true] %s48
      %s50 = sshll.u32 [#allocation7], 4
      %s51 = int_to_ptr.vmem [resolvable:$true] %s50
      %56 = dma.hbm_to_vmem [thread:$0]  %s49, 2048, %s51, [#allocation6], 128, 128, 8
    $region17: #{tpu_custom_call.1} parent=1 // pred_fallthru
      _
    // Predicated region
    $region18: #{tpu_custom_call.1} parent=1 // pred_check
      _
    $region19: #{tpu_custom_call.1} parent=1 // pred_check_branch
      %58 = sbr.rel (0) target = $region21
    $region20: #{tpu_custom_call.1} parent=1 // pred_region
      %60 = vsyncadd [#allocation9], 0
      %s61 = sshll.u32 %s4, 4
      %s62 = int_to_ptr.hbm [resolvable:$true] %s61
      %s63 = sshll.u32 [#allocation8], 4
      %s64 = int_to_ptr.vmem [resolvable:$true] %s63
      %69 = dma.hbm_to_vmem [thread:$0]  %s62, 6144, %s64, [#allocation9], 384, 384, 24
    $region21: #{tpu_custom_call.1} parent=1 // pred_fallthru
      _
    // Predicated region
    $region22: #{tpu_custom_call.1} parent=1 // pred_check
      _
    $region23: #{tpu_custom_call.1} parent=1 // pred_check_branch
      %71 = sbr.rel (0) target = $region25
    $region24: #{tpu_custom_call.1} parent=1 // pred_region
      _
    $region25: #{tpu_custom_call.1} parent=1 // pred_fallthru
      _
    // Predicated region
    $region26: #{tpu_custom_call.1} parent=1 // pred_check
      _
    $region27: #{tpu_custom_call.1} parent=1 // pred_check_branch
      %73 = sbr.rel (0) target = $region29
    $region28: #{tpu_custom_call.1} parent=1 // pred_region
      %75 = vsyncadd [#allocation9], 0
      %s77 = sshll.u32 %s6, 4
      %s78 = int_to_ptr.hbm [resolvable:$true] %s77
      %s79 = sshll.u32 [#allocation10], 4
      %s80 = int_to_ptr.vmem [resolvable:$true] %s79
      %82 = dma.hbm_to_vmem [thread:$0]  %s78, 64, %s80, [#allocation9]
    $region29: #{tpu_custom_call.1} parent=1 // pred_fallthru
      _
    // Predicated region
    $region30: #{tpu_custom_call.1} parent=1 // pred_check
      _
    $region31: #{tpu_custom_call.1} parent=1 // pred_check_branch
      %84 = sbr.rel (0) target = $region33
    $region32: #{tpu_custom_call.1} parent=1 // pred_region
      %86 = dma.done [#allocation3], 1024
    $region33: #{tpu_custom_call.1} parent=1 // pred_fallthru
      _
    // Predicated region
    $region34: #{tpu_custom_call.1} parent=1 // pred_check
      _
    $region35: #{tpu_custom_call.1} parent=1 // pred_check_branch
      %88 = sbr.rel (0) target = $region37
    $region36: #{tpu_custom_call.1} parent=1 // pred_region
      %90 = dma.done [#allocation6], 1024
    $region37: #{tpu_custom_call.1} parent=1 // pred_fallthru
      _
    // Predicated region
    $region38: #{tpu_custom_call.1} parent=1 // pred_check
      _
    $region39: #{tpu_custom_call.1} parent=1 // pred_check_branch
      %92 = sbr.rel (0) target = $region41
    $region40: #{tpu_custom_call.1} parent=1 // pred_region
      %94 = dma.done [#allocation6], 2048
    $region41: #{tpu_custom_call.1} parent=1 // pred_fallthru
      _
    // Predicated region
    $region42: #{tpu_custom_call.1} parent=1 // pred_check
      _
    $region43: #{tpu_custom_call.1} parent=1 // pred_check_branch
      %96 = sbr.rel (0) target = $region45
    $region44: #{tpu_custom_call.1} parent=1 // pred_region
      %98 = dma.done [#allocation9], 6144
    $region45: #{tpu_custom_call.1} parent=1 // pred_fallthru
      _
    // Predicated region
    $region46: #{tpu_custom_call.1} parent=1 // pred_check
      _
    $region47: #{tpu_custom_call.1} parent=1 // pred_check_branch
      %100 = sbr.rel (0) target = $region49
    $region48: #{tpu_custom_call.1} parent=1 // pred_region
      %102 = dma.done [#allocation9], 64
    $region49: #{tpu_custom_call.1} parent=1 // pred_fallthru
      _
    %p103 = scmp.eq.s32.totalorder 0, 0
    // Predicated region
    $region50: #{tpu_custom_call.1} parent=1 // pred_check
      %p104 = pneg %p103
    $region51: #{tpu_custom_call.1} parent=1 // pred_check_branch
      %106 = sbr.rel (%p104) target = $region53
    $region52: #{tpu_custom_call.1} parent=1 // pred_region
      %107 = vst [vmem:[#allocation11] sm:$0xff] 0.0
      %108 = vst [vmem:[#allocation11 + $0x8] sm:$0xff] 0.0
      %109 = vst [vmem:[#allocation11 + $0x10] sm:$0xff] 0.0
      %110 = vst [vmem:[#allocation11 + $0x18] sm:$0xff] 0.0
      %111 = vst [vmem:[#allocation11 + $0x20] sm:$0xff] 0.0
      %112 = vst [vmem:[#allocation11 + $0x28] sm:$0xff] 0.0
      %113 = vst [vmem:[#allocation11 + $0x30] sm:$0xff] 0.0
      %114 = vst [vmem:[#allocation11 + $0x38] sm:$0xff] 0.0
      %115 = vst [vmem:[#allocation11 + $0x40] sm:$0xff] 0.0
      %116 = vst [vmem:[#allocation11 + $0x48] sm:$0xff] 0.0
      %117 = vst [vmem:[#allocation11 + $0x50] sm:$0xff] 0.0
      %118 = vst [vmem:[#allocation11 + $0x58] sm:$0xff] 0.0
      %119 = vst [vmem:[#allocation11 + $0x60] sm:$0xff] 0.0
      %120 = vst [vmem:[#allocation11 + $0x68] sm:$0xff] 0.0
      %121 = vst [vmem:[#allocation11 + $0x70] sm:$0xff] 0.0
      %122 = vst [vmem:[#allocation11 + $0x78] sm:$0xff] 0.0
    $region53: #{tpu_custom_call.1} parent=1 // pred_fallthru
      _
    %v123 = vld [vmem:[%s2] sm:$0xff]
    %v124 = vld [vmem:[%s2 + $0x8] sm:$0xff]
    %v125 = vld [vmem:[%s2 + $0x10] sm:$0xff]
    %v126 = vld [vmem:[%s2 + $0x18] sm:$0xff]
    %v127 = vld [vmem:[%s2 + $0x20] sm:$0xff]
    %v128 = vld [vmem:[%s2 + $0x28] sm:$0xff]
    %v129 = vld [vmem:[%s2 + $0x30] sm:$0xff]
    %v130 = vld [vmem:[%s2 + $0x38] sm:$0xff]
    %v131 = vld [vmem:[%s2 + $0x40] sm:$0xff]
    %v132 = vld [vmem:[%s2 + $0x48] sm:$0xff]
    %v133 = vld [vmem:[%s2 + $0x50] sm:$0xff]
    %v134 = vld [vmem:[%s2 + $0x58] sm:$0xff]
    %v135 = vld [vmem:[%s2 + $0x60] sm:$0xff]
    %v136 = vld [vmem:[%s2 + $0x68] sm:$0xff]
    %v137 = vld [vmem:[%s2 + $0x70] sm:$0xff]
    %v138 = vld [vmem:[%s2 + $0x78] sm:$0xff]
    %v139 = vld [vmem:[#allocation8] sm:$0xff]
    %v140 = vld [vmem:[#allocation8 + $0x8] sm:$0xff]
    %v141 = vld [vmem:[#allocation8 + $0x18] sm:$0xff]
    %v142 = vld [vmem:[#allocation8 + $0x20] sm:$0xff]
    %v143 = vld [vmem:[#allocation8 + $0x30] sm:$0xff]
    %v144 = vld [vmem:[#allocation8 + $0x38] sm:$0xff]
    %v145 = vld [vmem:[#allocation8 + $0x48] sm:$0xff]
    %v146 = vld [vmem:[#allocation8 + $0x50] sm:$0xff]
    %v147 = vld [vmem:[#allocation8 + $0x60] sm:$0xff]
    %v148 = vld [vmem:[#allocation8 + $0x68] sm:$0xff]
    %v149 = vld [vmem:[#allocation8 + $0x78] sm:$0xff]
    %v150 = vld [vmem:[#allocation8 + $0x80] sm:$0xff]
    %v151 = vld [vmem:[#allocation8 + $0x90] sm:$0xff]
    %v152 = vld [vmem:[#allocation8 + $0x98] sm:$0xff]
    %v153 = vld [vmem:[#allocation8 + $0xa8] sm:$0xff]
    %v154 = vld [vmem:[#allocation8 + $0xb0] sm:$0xff]
    %v155 = vld [vmem:[#allocation8 + $0xc0] sm:$0xff]
    %v156 = vld [vmem:[#allocation8 + $0xc8] sm:$0xff]
    %v157 = vld [vmem:[#allocation8 + $0xd8] sm:$0xff]
    %v158 = vld [vmem:[#allocation8 + $0xe0] sm:$0xff]
    %v159 = vld [vmem:[#allocation8 + $0xf0] sm:$0xff]
    %v160 = vld [vmem:[#allocation8 + $0xf8] sm:$0xff]
    %v161 = vld [vmem:[#allocation8 + $0x108] sm:$0xff]
    %v162 = vld [vmem:[#allocation8 + $0x110] sm:$0xff]
    %v163 = vld [vmem:[#allocation8 + $0x120] sm:$0xff]
    %v164 = vld [vmem:[#allocation8 + $0x128] sm:$0xff]
    %v165 = vld [vmem:[#allocation8 + $0x138] sm:$0xff]
    %v166 = vld [vmem:[#allocation8 + $0x140] sm:$0xff]
    %v167 = vld [vmem:[#allocation8 + $0x150] sm:$0xff]
    %v168 = vld [vmem:[#allocation8 + $0x158] sm:$0xff]
    %v169 = vld [vmem:[#allocation8 + $0x168] sm:$0xff]
    %v170 = vld [vmem:[#allocation8 + $0x170] sm:$0xff]
    %171 = vmatpush.msra.mxu0 %v169
    %172 = vmatpush.msra.mxu0 %v167
    %173 = vmatpush.msra.mxu0 %v165
    %174 = vmatpush.msra.mxu0 %v163
    %175 = vmatpush.msra.mxu0 %v161
    %176 = vmatpush.msra.mxu0 %v159
    %177 = vmatpush.msra.mxu0 %v157
    %178 = vmatpush.msra.mxu0 %v155
    %179 = vmatpush.msra.mxu0 %v153
    %180 = vmatpush.msra.mxu0 %v151
    %181 = vmatpush.msra.mxu0 %v149
    %182 = vmatpush.msra.mxu0 %v147
    %183 = vmatpush.msra.mxu0 %v145
    %184 = vmatpush.msra.mxu0 %v143
    %185 = vmatpush.msra.mxu0 %v141
    %186 = vmatpush.msra.mxu0 %v139
    %187 = vmatmul.f32.gmra.mxu0 %v123
    %v188 = vpop.f32.mrf.mxu0
    %v189 = vadd.f32 0.0, %v188
    %190 = vmatmul.f32.gmra.mxu0 %v124
    %v191 = vpop.f32.mrf.mxu0
    %v192 = vadd.f32 0.0, %v191
    %193 = vmatmul.f32.gmra.mxu0 %v125
    %v194 = vpop.f32.mrf.mxu0
    %v195 = vadd.f32 0.0, %v194
    %196 = vmatmul.f32.gmra.mxu0 %v126
    %v197 = vpop.f32.mrf.mxu0
    %v198 = vadd.f32 0.0, %v197
    %199 = vmatmul.f32.gmra.mxu0 %v127
    %v200 = vpop.f32.mrf.mxu0
    %v201 = vadd.f32 0.0, %v200
    %202 = vmatmul.f32.gmra.mxu0 %v128
    %v203 = vpop.f32.mrf.mxu0
    %v204 = vadd.f32 0.0, %v203
    %205 = vmatmul.f32.gmra.mxu0 %v129
    %v206 = vpop.f32.mrf.mxu0
    %v207 = vadd.f32 0.0, %v206
    %208 = vmatmul.f32.gmra.mxu0 %v130
    %v209 = vpop.f32.mrf.mxu0
    %v210 = vadd.f32 0.0, %v209
    %211 = vmatmul.f32.gmra.mxu0 %v131
    %v212 = vpop.f32.mrf.mxu0
    %v213 = vadd.f32 0.0, %v212
    %214 = vmatmul.f32.gmra.mxu0 %v132
    %v215 = vpop.f32.mrf.mxu0
    %v216 = vadd.f32 0.0, %v215
    %217 = vmatmul.f32.gmra.mxu0 %v133
    %v218 = vpop.f32.mrf.mxu0
    %v219 = vadd.f32 0.0, %v218
    %220 = vmatmul.f32.gmra.mxu0 %v134
    %v221 = vpop.f32.mrf.mxu0
    %v222 = vadd.f32 0.0, %v221
    %223 = vmatmul.f32.gmra.mxu0 %v135
    %v224 = vpop.f32.mrf.mxu0
    %v225 = vadd.f32 0.0, %v224
    %226 = vmatmul.f32.gmra.mxu0 %v136
    %v227 = vpop.f32.mrf.mxu0
    %v228 = vadd.f32 0.0, %v227
    %229 = vmatmul.f32.gmra.mxu0 %v137
    %v230 = vpop.f32.mrf.mxu0
    %v231 = vadd.f32 0.0, %v230
    %232 = vmatmul.f32.gmra.mxu0 %v138
    %v233 = vpop.f32.mrf.mxu0
    %v234 = vadd.f32 0.0, %v233
    %235 = vdwg.mxu0
    %236 = vmatpush.msra.mxu0 %v170
    %237 = vmatpush.msra.mxu0 %v168
    %238 = vmatpush.msra.mxu0 %v166
    %239 = vmatpush.msra.mxu0 %v164
    %240 = vmatpush.msra.mxu0 %v162
    %241 = vmatpush.msra.mxu0 %v160
    %242 = vmatpush.msra.mxu0 %v158
    %243 = vmatpush.msra.mxu0 %v156
    %244 = vmatpush.msra.mxu0 %v154
    %245 = vmatpush.msra.mxu0 %v152
    %246 = vmatpush.msra.mxu0 %v150
    %247 = vmatpush.msra.mxu0 %v148
    %248 = vmatpush.msra.mxu0 %v146
    %249 = vmatpush.msra.mxu0 %v144
    %250 = vmatpush.msra.mxu0 %v142
    %251 = vmatpush.msra.mxu0 %v140
    %252 = vmatmul.f32.gmra.mxu0 %v123
    %v253 = vpop.f32.mrf.mxu0
    %v254 = vadd.f32 0.0, %v253
    %255 = vmatmul.f32.gmra.mxu0 %v124
    %v256 = vpop.f32.mrf.mxu0
    %v257 = vadd.f32 0.0, %v256
    %258 = vmatmul.f32.gmra.mxu0 %v125
    %v259 = vpop.f32.mrf.mxu0
    %v260 = vadd.f32 0.0, %v259
    %261 = vmatmul.f32.gmra.mxu0 %v126
    %v262 = vpop.f32.mrf.mxu0
    %v263 = vadd.f32 0.0, %v262
    %264 = vmatmul.f32.gmra.mxu0 %v127
    %v265 = vpop.f32.mrf.mxu0
    %v266 = vadd.f32 0.0, %v265
    %267 = vmatmul.f32.gmra.mxu0 %v128
    %v268 = vpop.f32.mrf.mxu0
    %v269 = vadd.f32 0.0, %v268
    %270 = vmatmul.f32.gmra.mxu0 %v129
    %v271 = vpop.f32.mrf.mxu0
    %v272 = vadd.f32 0.0, %v271
    %273 = vmatmul.f32.gmra.mxu0 %v130
    %v274 = vpop.f32.mrf.mxu0
    %v275 = vadd.f32 0.0, %v274
    %276 = vmatmul.f32.gmra.mxu0 %v131
    %v277 = vpop.f32.mrf.mxu0
    %v278 = vadd.f32 0.0, %v277
    %279 = vmatmul.f32.gmra.mxu0 %v132
    %v280 = vpop.f32.mrf.mxu0
    %v281 = vadd.f32 0.0, %v280
    %282 = vmatmul.f32.gmra.mxu0 %v133
    %v283 = vpop.f32.mrf.mxu0
    %v284 = vadd.f32 0.0, %v283
    %285 = vmatmul.f32.gmra.mxu0 %v134
    %v286 = vpop.f32.mrf.mxu0
    %v287 = vadd.f32 0.0, %v286
    %288 = vmatmul.f32.gmra.mxu0 %v135
    %v289 = vpop.f32.mrf.mxu0
    %v290 = vadd.f32 0.0, %v289
    %291 = vmatmul.f32.gmra.mxu0 %v136
    %v292 = vpop.f32.mrf.mxu0
    %v293 = vadd.f32 0.0, %v292
    %294 = vmatmul.f32.gmra.mxu0 %v137
    %v295 = vpop.f32.mrf.mxu0
    %v296 = vadd.f32 0.0, %v295
    %297 = vmatmul.f32.gmra.mxu0 %v138
    %v298 = vpop.f32.mrf.mxu0
    %v299 = vadd.f32 0.0, %v298
    %300 = vdwg.mxu0
    %v301 = vpack.c.bf16 %v254, %v189
    %v302 = vpack.c.bf16 %v257, %v192
    %v303 = vpack.c.bf16 %v260, %v195
    %v304 = vpack.c.bf16 %v263, %v198
    %v305 = vpack.c.bf16 %v266, %v201
    %v306 = vpack.c.bf16 %v269, %v204
    %v307 = vpack.c.bf16 %v272, %v207
    %v308 = vpack.c.bf16 %v275, %v210
    %v309 = vpack.c.bf16 %v278, %v213
    %v310 = vpack.c.bf16 %v281, %v216
    %v311 = vpack.c.bf16 %v284, %v219
    %v312 = vpack.c.bf16 %v287, %v222
    %v313 = vpack.c.bf16 %v290, %v225
    %v314 = vpack.c.bf16 %v293, %v228
    %v315 = vpack.c.bf16 %v296, %v231
    %v316 = vpack.c.bf16 %v299, %v234
    %v317 = vld [vmem:[%s5] sm:$0xff]
    %v318 = vld [vmem:[%s5 + $0x8] sm:$0xff]
    %v319 = vld [vmem:[%s5 + $0x10] sm:$0xff]
    %v320 = vld [vmem:[%s5 + $0x18] sm:$0xff]
    %v321 = vld [vmem:[%s5 + $0x20] sm:$0xff]
    %v322 = vld [vmem:[%s5 + $0x28] sm:$0xff]
    %v323 = vld [vmem:[%s5 + $0x30] sm:$0xff]
    %v324 = vld [vmem:[%s5 + $0x38] sm:$0xff]
    %v325 = vld [vmem:[%s5 + $0x40] sm:$0xff]
    %v326 = vld [vmem:[%s5 + $0x48] sm:$0xff]
    %v327 = vld [vmem:[%s5 + $0x50] sm:$0xff]
    %v328 = vld [vmem:[%s5 + $0x58] sm:$0xff]
    %v329 = vld [vmem:[%s5 + $0x60] sm:$0xff]
    %v330 = vld [vmem:[%s5 + $0x68] sm:$0xff]
    %v331 = vld [vmem:[%s5 + $0x70] sm:$0xff]
    %v332 = vld [vmem:[%s5 + $0x78] sm:$0xff]
    %v333 = vld [vmem:[#allocation11] sm:$0xff]
    %v334 = vld [vmem:[#allocation11 + $0x8] sm:$0xff]
    %v335 = vld [vmem:[#allocation11 + $0x10] sm:$0xff]
    %v336 = vld [vmem:[#allocation11 + $0x18] sm:$0xff]
    %v337 = vld [vmem:[#allocation11 + $0x20] sm:$0xff]
    %v338 = vld [vmem:[#allocation11 + $0x28] sm:$0xff]
    %v339 = vld [vmem:[#allocation11 + $0x30] sm:$0xff]
    %v340 = vld [vmem:[#allocation11 + $0x38] sm:$0xff]
    %v341 = vld [vmem:[#allocation11 + $0x40] sm:$0xff]
    %v342 = vld [vmem:[#allocation11 + $0x48] sm:$0xff]
    %v343 = vld [vmem:[#allocation11 + $0x50] sm:$0xff]
    %v344 = vld [vmem:[#allocation11 + $0x58] sm:$0xff]
    %v345 = vld [vmem:[#allocation11 + $0x60] sm:$0xff]
    %v346 = vld [vmem:[#allocation11 + $0x68] sm:$0xff]
    %v347 = vld [vmem:[#allocation11 + $0x70] sm:$0xff]
    %v348 = vld [vmem:[#allocation11 + $0x78] sm:$0xff]
    %v349 = vld [vmem:[#allocation2] sm:$0xf]
    %v350 = vld [vmem:[#allocation2 + $0x4] sm:$0xf]
    %v351 = vld [vmem:[#allocation2 + $0x8] sm:$0xf]
    %v352 = vld [vmem:[#allocation2 + $0xc] sm:$0xf]
    %v353 = vld [vmem:[#allocation2 + $0x10] sm:$0xf]
    %v354 = vld [vmem:[#allocation2 + $0x14] sm:$0xf]
    %v355 = vld [vmem:[#allocation2 + $0x18] sm:$0xf]
    %v356 = vld [vmem:[#allocation2 + $0x1c] sm:$0xf]
    %v357 = vld [vmem:[#allocation2 + $0x20] sm:$0xf]
    %v358 = vld [vmem:[#allocation2 + $0x24] sm:$0xf]
    %v359 = vld [vmem:[#allocation2 + $0x28] sm:$0xf]
    %v360 = vld [vmem:[#allocation2 + $0x2c] sm:$0xf]
    %v361 = vld [vmem:[#allocation2 + $0x30] sm:$0xf]
    %v362 = vld [vmem:[#allocation2 + $0x34] sm:$0xf]
    %v363 = vld [vmem:[#allocation2 + $0x38] sm:$0xf]
    %v364 = vld [vmem:[#allocation2 + $0x3c] sm:$0xf]
    %v381 = vunpack.c.l.b16 %v349
    %v382 = vunpack.c.l.b16 %v350
    %v383 = vunpack.c.l.b16 %v351
    %v384 = vunpack.c.l.b16 %v352
    %v385 = vunpack.c.l.b16 %v353
    %v386 = vunpack.c.l.b16 %v354
    %v387 = vunpack.c.l.b16 %v355
    %v388 = vunpack.c.l.b16 %v356
    %v389 = vunpack.c.l.b16 %v357
    %v390 = vunpack.c.l.b16 %v358
    %v391 = vunpack.c.l.b16 %v359
    %v392 = vunpack.c.l.b16 %v360
    %v393 = vunpack.c.l.b16 %v361
    %v394 = vunpack.c.l.b16 %v362
    %v395 = vunpack.c.l.b16 %v363
    %v396 = vunpack.c.l.b16 %v364
    %v397 = vpack.c.b16 %v382, %v381
    %v398 = vpack.c.b16 %v384, %v383
    %v399 = vpack.c.b16 %v386, %v385
    %v400 = vpack.c.b16 %v388, %v387
    %v401 = vpack.c.b16 %v390, %v389
    %v402 = vpack.c.b16 %v392, %v391
    %v403 = vpack.c.b16 %v394, %v393
    %v404 = vpack.c.b16 %v396, %v395
    %v429 = vunpack.c.l.b16 %v301
    %v430 = vunpack.c.l.b16 %v302
    %v431 = vunpack.c.l.b16 %v303
    %v432 = vunpack.c.l.b16 %v304
    %v433 = vunpack.c.l.b16 %v305
    %v434 = vunpack.c.l.b16 %v306
    %v435 = vunpack.c.l.b16 %v307
    %v436 = vunpack.c.l.b16 %v308
    %v437 = vunpack.c.l.b16 %v309
    %v438 = vunpack.c.l.b16 %v310
    %v439 = vunpack.c.l.b16 %v311
    %v440 = vunpack.c.l.b16 %v312
    %v441 = vunpack.c.l.b16 %v313
    %v442 = vunpack.c.l.b16 %v314
    %v443 = vunpack.c.l.b16 %v315
    %v444 = vunpack.c.l.b16 %v316
    %v445 = vpack.c.b16 %v430, %v429
    %v446 = vpack.c.b16 %v432, %v431
    %v447 = vpack.c.b16 %v434, %v433
    %v448 = vpack.c.b16 %v436, %v435
    %v449 = vpack.c.b16 %v438, %v437
    %v450 = vpack.c.b16 %v440, %v439
    %v451 = vpack.c.b16 %v442, %v441
    %v452 = vpack.c.b16 %v444, %v443
    %461 = vmatpush.bf16.msra.mxu0 %v452
    %462 = vmatpush.bf16.msra.mxu0 %v451
    %463 = vmatpush.bf16.msra.mxu0 %v450
    %464 = vmatpush.bf16.msra.mxu0 %v449
    %465 = vmatpush.bf16.msra.mxu0 %v448
    %466 = vmatpush.bf16.msra.mxu0 %v447
    %467 = vmatpush.bf16.msra.mxu0 %v446
    %468 = vmatpush.bf16.msra.mxu0 %v445
    %469 = vmatmul.bf16.gmra.mxu0 %v397
    %v470 = vpop.f32.mrf.mxu0
    %v471 = vadd.f32 0.0, %v470
    %v472 = vpop.f32.mrf.mxu0
    %v473 = vadd.f32 0.0, %v472
    %474 = vmatmul.bf16.gmra.mxu0 %v398
    %v475 = vpop.f32.mrf.mxu0
    %v476 = vadd.f32 0.0, %v475
    %v477 = vpop.f32.mrf.mxu0
    %v478 = vadd.f32 0.0, %v477
    %479 = vmatmul.bf16.gmra.mxu0 %v399
    %v480 = vpop.f32.mrf.mxu0
    %v481 = vadd.f32 0.0, %v480
    %v482 = vpop.f32.mrf.mxu0
    %v483 = vadd.f32 0.0, %v482
    %484 = vmatmul.bf16.gmra.mxu0 %v400
    %v485 = vpop.f32.mrf.mxu0
    %v486 = vadd.f32 0.0, %v485
    %v487 = vpop.f32.mrf.mxu0
    %v488 = vadd.f32 0.0, %v487
    %489 = vmatmul.bf16.gmra.mxu0 %v401
    %v490 = vpop.f32.mrf.mxu0
    %v491 = vadd.f32 0.0, %v490
    %v492 = vpop.f32.mrf.mxu0
    %v493 = vadd.f32 0.0, %v492
    %494 = vmatmul.bf16.gmra.mxu0 %v402
    %v495 = vpop.f32.mrf.mxu0
    %v496 = vadd.f32 0.0, %v495
    %v497 = vpop.f32.mrf.mxu0
    %v498 = vadd.f32 0.0, %v497
    %499 = vmatmul.bf16.gmra.mxu0 %v403
    %v500 = vpop.f32.mrf.mxu0
    %v501 = vadd.f32 0.0, %v500
    %v502 = vpop.f32.mrf.mxu0
    %v503 = vadd.f32 0.0, %v502
    %504 = vmatmul.bf16.gmra.mxu0 %v404
    %v505 = vpop.f32.mrf.mxu0
    %v506 = vadd.f32 0.0, %v505
    %v507 = vpop.f32.mrf.mxu0
    %v508 = vadd.f32 0.0, %v507
    %509 = vdwg.mxu0
    %511 = vset.pattern.permute.xlu0 0
    %512 = vperm.xlu0 %511, %v317
    %v513 = vpop.permute.xlu0 %512
    %516 = vset.pattern.permute.xlu0 0
    %517 = vperm.xlu0 %516, %v318
    %v518 = vpop.permute.xlu0 %517
    %521 = vset.pattern.permute.xlu0 0
    %522 = vperm.xlu0 %521, %v319
    %v523 = vpop.permute.xlu0 %522
    %526 = vset.pattern.permute.xlu0 0
    %527 = vperm.xlu0 %526, %v320
    %v528 = vpop.permute.xlu0 %527
    %531 = vset.pattern.permute.xlu0 0
    %532 = vperm.xlu0 %531, %v321
    %v533 = vpop.permute.xlu0 %532
    %536 = vset.pattern.permute.xlu0 0
    %537 = vperm.xlu0 %536, %v322
    %v538 = vpop.permute.xlu0 %537
    %541 = vset.pattern.permute.xlu0 0
    %542 = vperm.xlu0 %541, %v323
    %v543 = vpop.permute.xlu0 %542
    %546 = vset.pattern.permute.xlu0 0
    %547 = vperm.xlu0 %546, %v324
    %v548 = vpop.permute.xlu0 %547
    %551 = vset.pattern.permute.xlu0 0
    %552 = vperm.xlu0 %551, %v325
    %v553 = vpop.permute.xlu0 %552
    %556 = vset.pattern.permute.xlu0 0
    %557 = vperm.xlu0 %556, %v326
    %v558 = vpop.permute.xlu0 %557
    %561 = vset.pattern.permute.xlu0 0
    %562 = vperm.xlu0 %561, %v327
    %v563 = vpop.permute.xlu0 %562
    %566 = vset.pattern.permute.xlu0 0
    %567 = vperm.xlu0 %566, %v328
    %v568 = vpop.permute.xlu0 %567
    %571 = vset.pattern.permute.xlu0 0
    %572 = vperm.xlu0 %571, %v329
    %v573 = vpop.permute.xlu0 %572
    %576 = vset.pattern.permute.xlu0 0
    %577 = vperm.xlu0 %576, %v330
    %v578 = vpop.permute.xlu0 %577
    %581 = vset.pattern.permute.xlu0 0
    %582 = vperm.xlu0 %581, %v331
    %v583 = vpop.permute.xlu0 %582
    %586 = vset.pattern.permute.xlu0 0
    %587 = vperm.xlu0 %586, %v332
    %v588 = vpop.permute.xlu0 %587
    %v590 = vmul.f32 %v513, %v471
    %v591 = vmul.f32 %v518, %v473
    %v592 = vmul.f32 %v523, %v476
    %v593 = vmul.f32 %v528, %v478
    %v594 = vmul.f32 %v533, %v481
    %v595 = vmul.f32 %v538, %v483
    %v596 = vmul.f32 %v543, %v486
    %v597 = vmul.f32 %v548, %v488
    %v598 = vmul.f32 %v553, %v491
    %v599 = vmul.f32 %v558, %v493
    %v600 = vmul.f32 %v563, %v496
    %v601 = vmul.f32 %v568, %v498
    %v602 = vmul.f32 %v573, %v501
    %v603 = vmul.f32 %v578, %v503
    %v604 = vmul.f32 %v583, %v506
    %v605 = vmul.f32 %v588, %v508
    %v606 = vld [vmem:[#allocation5] sm:$0xf]
    %v607 = vld [vmem:[#allocation5 + $0x4] sm:$0xf]
    %v608 = vld [vmem:[#allocation5 + $0x8] sm:$0xf]
    %v609 = vld [vmem:[#allocation5 + $0xc] sm:$0xf]
    %v610 = vld [vmem:[#allocation5 + $0x10] sm:$0xf]
    %v611 = vld [vmem:[#allocation5 + $0x14] sm:$0xf]
    %v612 = vld [vmem:[#allocation5 + $0x18] sm:$0xf]
    %v613 = vld [vmem:[#allocation5 + $0x1c] sm:$0xf]
    %v614 = vld [vmem:[#allocation5 + $0x20] sm:$0xf]
    %v615 = vld [vmem:[#allocation5 + $0x24] sm:$0xf]
    %v616 = vld [vmem:[#allocation5 + $0x28] sm:$0xf]
    %v617 = vld [vmem:[#allocation5 + $0x2c] sm:$0xf]
    %v618 = vld [vmem:[#allocation5 + $0x30] sm:$0xf]
    %v619 = vld [vmem:[#allocation5 + $0x34] sm:$0xf]
    %v620 = vld [vmem:[#allocation5 + $0x38] sm:$0xf]
    %v621 = vld [vmem:[#allocation5 + $0x3c] sm:$0xf]
    %v638 = vunpack.c.l.b16 %v606
    %v639 = vunpack.c.l.b16 %v607
    %v640 = vunpack.c.l.b16 %v608
    %v641 = vunpack.c.l.b16 %v609
    %v642 = vunpack.c.l.b16 %v610
    %v643 = vunpack.c.l.b16 %v611
    %v644 = vunpack.c.l.b16 %v612
    %v645 = vunpack.c.l.b16 %v613
    %v646 = vunpack.c.l.b16 %v614
    %v647 = vunpack.c.l.b16 %v615
    %v648 = vunpack.c.l.b16 %v616
    %v649 = vunpack.c.l.b16 %v617
    %v650 = vunpack.c.l.b16 %v618
    %v651 = vunpack.c.l.b16 %v619
    %v652 = vunpack.c.l.b16 %v620
    %v653 = vunpack.c.l.b16 %v621
    %v654 = vpack.c.b16 %v639, %v638
    %v655 = vpack.c.b16 %v641, %v640
    %v656 = vpack.c.b16 %v643, %v642
    %v657 = vpack.c.b16 %v645, %v644
    %v658 = vpack.c.b16 %v647, %v646
    %v659 = vpack.c.b16 %v649, %v648
    %v660 = vpack.c.b16 %v651, %v650
    %v661 = vpack.c.b16 %v653, %v652
    %v670 = vunpack.c.h.b16 %v301
    %v671 = vunpack.c.h.b16 %v302
    %v672 = vunpack.c.h.b16 %v303
    %v673 = vunpack.c.h.b16 %v304
    %v674 = vunpack.c.h.b16 %v305
    %v675 = vunpack.c.h.b16 %v306
    %v676 = vunpack.c.h.b16 %v307
    %v677 = vunpack.c.h.b16 %v308
    %v678 = vunpack.c.h.b16 %v309
    %v679 = vunpack.c.h.b16 %v310
    %v680 = vunpack.c.h.b16 %v311
    %v681 = vunpack.c.h.b16 %v312
    %v682 = vunpack.c.h.b16 %v313
    %v683 = vunpack.c.h.b16 %v314
    %v684 = vunpack.c.h.b16 %v315
    %v685 = vunpack.c.h.b16 %v316
    %v686 = vpack.c.b16 %v671, %v670
    %v687 = vpack.c.b16 %v673, %v672
    %v688 = vpack.c.b16 %v675, %v674
    %v689 = vpack.c.b16 %v677, %v676
    %v690 = vpack.c.b16 %v679, %v678
    %v691 = vpack.c.b16 %v681, %v680
    %v692 = vpack.c.b16 %v683, %v682
    %v693 = vpack.c.b16 %v685, %v684
    %702 = vmatpush.bf16.msra.mxu0 %v693
    %703 = vmatpush.bf16.msra.mxu0 %v692
    %704 = vmatpush.bf16.msra.mxu0 %v691
    %705 = vmatpush.bf16.msra.mxu0 %v690
    %706 = vmatpush.bf16.msra.mxu0 %v689
    %707 = vmatpush.bf16.msra.mxu0 %v688
    %708 = vmatpush.bf16.msra.mxu0 %v687
    %709 = vmatpush.bf16.msra.mxu0 %v686
    %710 = vmatmul.bf16.gmra.mxu0 %v654
    %v711 = vpop.f32.mrf.mxu0
    %v712 = vadd.f32 0.0, %v711
    %v713 = vpop.f32.mrf.mxu0
    %v714 = vadd.f32 0.0, %v713
    %715 = vmatmul.bf16.gmra.mxu0 %v655
    %v716 = vpop.f32.mrf.mxu0
    %v717 = vadd.f32 0.0, %v716
    %v718 = vpop.f32.mrf.mxu0
    %v719 = vadd.f32 0.0, %v718
    %720 = vmatmul.bf16.gmra.mxu0 %v656
    %v721 = vpop.f32.mrf.mxu0
    %v722 = vadd.f32 0.0, %v721
    %v723 = vpop.f32.mrf.mxu0
    %v724 = vadd.f32 0.0, %v723
    %725 = vmatmul.bf16.gmra.mxu0 %v657
    %v726 = vpop.f32.mrf.mxu0
    %v727 = vadd.f32 0.0, %v726
    %v728 = vpop.f32.mrf.mxu0
    %v729 = vadd.f32 0.0, %v728
    %730 = vmatmul.bf16.gmra.mxu0 %v658
    %v731 = vpop.f32.mrf.mxu0
    %v732 = vadd.f32 0.0, %v731
    %v733 = vpop.f32.mrf.mxu0
    %v734 = vadd.f32 0.0, %v733
    %735 = vmatmul.bf16.gmra.mxu0 %v659
    %v736 = vpop.f32.mrf.mxu0
    %v737 = vadd.f32 0.0, %v736
    %v738 = vpop.f32.mrf.mxu0
    %v739 = vadd.f32 0.0, %v738
    %740 = vmatmul.bf16.gmra.mxu0 %v660
    %v741 = vpop.f32.mrf.mxu0
    %v742 = vadd.f32 0.0, %v741
    %v743 = vpop.f32.mrf.mxu0
    %v744 = vadd.f32 0.0, %v743
    %745 = vmatmul.bf16.gmra.mxu0 %v661
    %v746 = vpop.f32.mrf.mxu0
    %v747 = vadd.f32 0.0, %v746
    %v748 = vpop.f32.mrf.mxu0
    %v749 = vadd.f32 0.0, %v748
    %750 = vdwg.mxu0
    %751 = vset.pattern.permute.xlu0 1
    %752 = vperm.xlu0 %751, %v317
    %v753 = vpop.permute.xlu0 %752
    %755 = vset.pattern.permute.xlu0 1
    %756 = vperm.xlu0 %755, %v318
    %v757 = vpop.permute.xlu0 %756
    %759 = vset.pattern.permute.xlu0 1
    %760 = vperm.xlu0 %759, %v319
    %v761 = vpop.permute.xlu0 %760
    %763 = vset.pattern.permute.xlu0 1
    %764 = vperm.xlu0 %763, %v320
    %v765 = vpop.permute.xlu0 %764
    %767 = vset.pattern.permute.xlu0 1
    %768 = vperm.xlu0 %767, %v321
    %v769 = vpop.permute.xlu0 %768
    %771 = vset.pattern.permute.xlu0 1
    %772 = vperm.xlu0 %771, %v322
    %v773 = vpop.permute.xlu0 %772
    %775 = vset.pattern.permute.xlu0 1
    %776 = vperm.xlu0 %775, %v323
    %v777 = vpop.permute.xlu0 %776
    %779 = vset.pattern.permute.xlu0 1
    %780 = vperm.xlu0 %779, %v324
    %v781 = vpop.permute.xlu0 %780
    %783 = vset.pattern.permute.xlu0 1
    %784 = vperm.xlu0 %783, %v325
    %v785 = vpop.permute.xlu0 %784
    %787 = vset.pattern.permute.xlu0 1
    %788 = vperm.xlu0 %787, %v326
    %v789 = vpop.permute.xlu0 %788
    %791 = vset.pattern.permute.xlu0 1
    %792 = vperm.xlu0 %791, %v327
    %v793 = vpop.permute.xlu0 %792
    %795 = vset.pattern.permute.xlu0 1
    %796 = vperm.xlu0 %795, %v328
    %v797 = vpop.permute.xlu0 %796
    %799 = vset.pattern.permute.xlu0 1
    %800 = vperm.xlu0 %799, %v329
    %v801 = vpop.permute.xlu0 %800
    %803 = vset.pattern.permute.xlu0 1
    %804 = vperm.xlu0 %803, %v330
    %v805 = vpop.permute.xlu0 %804
    %807 = vset.pattern.permute.xlu0 1
    %808 = vperm.xlu0 %807, %v331
    %v809 = vpop.permute.xlu0 %808
    %811 = vset.pattern.permute.xlu0 1
    %812 = vperm.xlu0 %811, %v332
    %v813 = vpop.permute.xlu0 %812
    %v815 = vmul.f32 %v753, %v712
    %v816 = vmul.f32 %v757, %v714
    %v817 = vmul.f32 %v761, %v717
    %v818 = vmul.f32 %v765, %v719
    %v819 = vmul.f32 %v769, %v722
    %v820 = vmul.f32 %v773, %v724
    %v821 = vmul.f32 %v777, %v727
    %v822 = vmul.f32 %v781, %v729
    %v823 = vmul.f32 %v785, %v732
    %v824 = vmul.f32 %v789, %v734
    %v825 = vmul.f32 %v793, %v737
    %v826 = vmul.f32 %v797, %v739
    %v827 = vmul.f32 %v801, %v742
    %v828 = vmul.f32 %v805, %v744
    %v829 = vmul.f32 %v809, %v747
    %v830 = vmul.f32 %v813, %v749
    %v831 = vadd.f32 %v590, %v815
    %v832 = vadd.f32 %v591, %v816
    %v833 = vadd.f32 %v592, %v817
    %v834 = vadd.f32 %v593, %v818
    %v835 = vadd.f32 %v594, %v819
    %v836 = vadd.f32 %v595, %v820
    %v837 = vadd.f32 %v596, %v821
    %v838 = vadd.f32 %v597, %v822
    %v839 = vadd.f32 %v598, %v823
    %v840 = vadd.f32 %v599, %v824
    %v841 = vadd.f32 %v600, %v825
    %v842 = vadd.f32 %v601, %v826
    %v843 = vadd.f32 %v602, %v827
    %v844 = vadd.f32 %v603, %v828
    %v845 = vadd.f32 %v604, %v829
    %v846 = vadd.f32 %v605, %v830
    %v847 = vadd.f32 %v333, %v831
    %v848 = vadd.f32 %v334, %v832
    %v849 = vadd.f32 %v335, %v833
    %v850 = vadd.f32 %v336, %v834
    %v851 = vadd.f32 %v337, %v835
    %v852 = vadd.f32 %v338, %v836
    %v853 = vadd.f32 %v339, %v837
    %v854 = vadd.f32 %v340, %v838
    %v855 = vadd.f32 %v341, %v839
    %v856 = vadd.f32 %v342, %v840
    %v857 = vadd.f32 %v343, %v841
    %v858 = vadd.f32 %v344, %v842
    %v859 = vadd.f32 %v345, %v843
    %v860 = vadd.f32 %v346, %v844
    %v861 = vadd.f32 %v347, %v845
    %v862 = vadd.f32 %v348, %v846
    %863 = vst [vmem:[#allocation11] sm:$0xff] %v847
    %864 = vst [vmem:[#allocation11 + $0x8] sm:$0xff] %v848
    %865 = vst [vmem:[#allocation11 + $0x10] sm:$0xff] %v849
    %866 = vst [vmem:[#allocation11 + $0x18] sm:$0xff] %v850
    %867 = vst [vmem:[#allocation11 + $0x20] sm:$0xff] %v851
    %868 = vst [vmem:[#allocation11 + $0x28] sm:$0xff] %v852
    %869 = vst [vmem:[#allocation11 + $0x30] sm:$0xff] %v853
    %870 = vst [vmem:[#allocation11 + $0x38] sm:$0xff] %v854
    %871 = vst [vmem:[#allocation11 + $0x40] sm:$0xff] %v855
    %872 = vst [vmem:[#allocation11 + $0x48] sm:$0xff] %v856
    %873 = vst [vmem:[#allocation11 + $0x50] sm:$0xff] %v857
    %874 = vst [vmem:[#allocation11 + $0x58] sm:$0xff] %v858
    %875 = vst [vmem:[#allocation11 + $0x60] sm:$0xff] %v859
    %876 = vst [vmem:[#allocation11 + $0x68] sm:$0xff] %v860
    %877 = vst [vmem:[#allocation11 + $0x70] sm:$0xff] %v861
    %878 = vst [vmem:[#allocation11 + $0x78] sm:$0xff] %v862
    // Predicated region
    $region54: #{tpu_custom_call.1} parent=1 // pred_check
      %p879 = pneg %p103
    $region55: #{tpu_custom_call.1} parent=1 // pred_check_branch
      %881 = sbr.rel (%p879) target = $region57
    $region56: #{tpu_custom_call.1} parent=1 // pred_region
      %v882 = vld [vmem:[#allocation10] sm:$0x7]
      %v883 = vld [vmem:[#allocation7] sm:$0xff]
      %v884 = vld [vmem:[#allocation7 + $0x8] sm:$0xff]
      %v885 = vld [vmem:[#allocation7 + $0x10] sm:$0xff]
      %v886 = vld [vmem:[#allocation7 + $0x18] sm:$0xff]
      %v887 = vld [vmem:[#allocation7 + $0x20] sm:$0xff]
      %v888 = vld [vmem:[#allocation7 + $0x28] sm:$0xff]
      %v889 = vld [vmem:[#allocation7 + $0x30] sm:$0xff]
      %v890 = vld [vmem:[#allocation7 + $0x38] sm:$0xff]
      %v891 = vld [vmem:[#allocation7 + $0x40] sm:$0xff]
      %v892 = vld [vmem:[#allocation7 + $0x48] sm:$0xff]
      %v893 = vld [vmem:[#allocation7 + $0x50] sm:$0xff]
      %v894 = vld [vmem:[#allocation7 + $0x58] sm:$0xff]
      %v895 = vld [vmem:[#allocation7 + $0x60] sm:$0xff]
      %v896 = vld [vmem:[#allocation7 + $0x68] sm:$0xff]
      %v897 = vld [vmem:[#allocation7 + $0x70] sm:$0xff]
      %v898 = vld [vmem:[#allocation7 + $0x78] sm:$0xff]
      %v899 = vld [vmem:[#allocation8 + $0x10] sm:$0xff]
      %v900 = vld [vmem:[#allocation8 + $0x28] sm:$0xff]
      %v901 = vld [vmem:[#allocation8 + $0x40] sm:$0xff]
      %v902 = vld [vmem:[#allocation8 + $0x58] sm:$0xff]
      %v903 = vld [vmem:[#allocation8 + $0x70] sm:$0xff]
      %v904 = vld [vmem:[#allocation8 + $0x88] sm:$0xff]
      %v905 = vld [vmem:[#allocation8 + $0xa0] sm:$0xff]
      %v906 = vld [vmem:[#allocation8 + $0xb8] sm:$0xff]
      %v907 = vld [vmem:[#allocation8 + $0xd0] sm:$0xff]
      %v908 = vld [vmem:[#allocation8 + $0xe8] sm:$0xff]
      %v909 = vld [vmem:[#allocation8 + $0x100] sm:$0xff]
      %v910 = vld [vmem:[#allocation8 + $0x118] sm:$0xff]
      %v911 = vld [vmem:[#allocation8 + $0x130] sm:$0xff]
      %v912 = vld [vmem:[#allocation8 + $0x148] sm:$0xff]
      %v913 = vld [vmem:[#allocation8 + $0x160] sm:$0xff]
      %v914 = vld [vmem:[#allocation8 + $0x178] sm:$0xff]
      %v915 = vperm.slane %v882, 2
      %916 = vmatpush.msra.mxu0 %v914
      %917 = vmatpush.msra.mxu0 %v913
      %918 = vmatpush.msra.mxu0 %v912
      %919 = vmatpush.msra.mxu0 %v911
      %920 = vmatpush.msra.mxu0 %v910
      %921 = vmatpush.msra.mxu0 %v909
      %922 = vmatpush.msra.mxu0 %v908
      %923 = vmatpush.msra.mxu0 %v907
      %924 = vmatpush.msra.mxu0 %v906
      %925 = vmatpush.msra.mxu0 %v905
      %926 = vmatpush.msra.mxu0 %v904
      %927 = vmatpush.msra.mxu0 %v903
      %928 = vmatpush.msra.mxu0 %v902
      %929 = vmatpush.msra.mxu0 %v901
      %930 = vmatpush.msra.mxu0 %v900
      %931 = vmatpush.msra.mxu0 %v899
      %932 = vmatmul.f32.gmra.mxu0 %v883
      %v933 = vpop.f32.mrf.mxu0
      %v934 = vadd.f32 %v915, %v933
      %935 = vmatmul.f32.gmra.mxu0 %v884
      %v936 = vpop.f32.mrf.mxu0
      %v937 = vadd.f32 %v915, %v936
      %938 = vmatmul.f32.gmra.mxu0 %v885
      %v939 = vpop.f32.mrf.mxu0
      %v940 = vadd.f32 %v915, %v939
      %941 = vmatmul.f32.gmra.mxu0 %v886
      %v942 = vpop.f32.mrf.mxu0
      %v943 = vadd.f32 %v915, %v942
      %944 = vmatmul.f32.gmra.mxu0 %v887
      %v945 = vpop.f32.mrf.mxu0
      %v946 = vadd.f32 %v915, %v945
      %947 = vmatmul.f32.gmra.mxu0 %v888
      %v948 = vpop.f32.mrf.mxu0
      %v949 = vadd.f32 %v915, %v948
      %950 = vmatmul.f32.gmra.mxu0 %v889
      %v951 = vpop.f32.mrf.mxu0
      %v952 = vadd.f32 %v915, %v951
      %953 = vmatmul.f32.gmra.mxu0 %v890
      %v954 = vpop.f32.mrf.mxu0
      %v955 = vadd.f32 %v915, %v954
      %956 = vmatmul.f32.gmra.mxu0 %v891
      %v957 = vpop.f32.mrf.mxu0
      %v958 = vadd.f32 %v915, %v957
      %959 = vmatmul.f32.gmra.mxu0 %v892
      %v960 = vpop.f32.mrf.mxu0
      %v961 = vadd.f32 %v915, %v960
      %962 = vmatmul.f32.gmra.mxu0 %v893
      %v963 = vpop.f32.mrf.mxu0
      %v964 = vadd.f32 %v915, %v963
      %965 = vmatmul.f32.gmra.mxu0 %v894
      %v966 = vpop.f32.mrf.mxu0
      %v967 = vadd.f32 %v915, %v966
      %968 = vmatmul.f32.gmra.mxu0 %v895
      %v969 = vpop.f32.mrf.mxu0
      %v970 = vadd.f32 %v915, %v969
      %971 = vmatmul.f32.gmra.mxu0 %v896
      %v972 = vpop.f32.mrf.mxu0
      %v973 = vadd.f32 %v915, %v972
      %974 = vmatmul.f32.gmra.mxu0 %v897
      %v975 = vpop.f32.mrf.mxu0
      %v976 = vadd.f32 %v915, %v975
      %977 = vmatmul.f32.gmra.mxu0 %v898
      %v978 = vpop.f32.mrf.mxu0
      %v979 = vadd.f32 %v915, %v978
      %980 = vdwg.mxu0
      %v981 = vld [vmem:[#allocation11] sm:$0xff]
      %v982 = vld [vmem:[#allocation11 + $0x8] sm:$0xff]
      %v983 = vld [vmem:[#allocation11 + $0x10] sm:$0xff]
      %v984 = vld [vmem:[#allocation11 + $0x18] sm:$0xff]
      %v985 = vld [vmem:[#allocation11 + $0x20] sm:$0xff]
      %v986 = vld [vmem:[#allocation11 + $0x28] sm:$0xff]
      %v987 = vld [vmem:[#allocation11 + $0x30] sm:$0xff]
      %v988 = vld [vmem:[#allocation11 + $0x38] sm:$0xff]
      %v989 = vld [vmem:[#allocation11 + $0x40] sm:$0xff]
      %v990 = vld [vmem:[#allocation11 + $0x48] sm:$0xff]
      %v991 = vld [vmem:[#allocation11 + $0x50] sm:$0xff]
      %v992 = vld [vmem:[#allocation11 + $0x58] sm:$0xff]
      %v993 = vld [vmem:[#allocation11 + $0x60] sm:$0xff]
      %v994 = vld [vmem:[#allocation11 + $0x68] sm:$0xff]
      %v995 = vld [vmem:[#allocation11 + $0x70] sm:$0xff]
      %v996 = vld [vmem:[#allocation11 + $0x78] sm:$0xff]
      %v997 = vperm.slane %v882, 0
      %v998 = vmul.f32 %v513, %v997
      %v999 = vmul.f32 %v518, %v997
      %v1000 = vmul.f32 %v523, %v997
      %v1001 = vmul.f32 %v528, %v997
      %v1002 = vmul.f32 %v533, %v997
      %v1003 = vmul.f32 %v538, %v997
      %v1004 = vmul.f32 %v543, %v997
      %v1005 = vmul.f32 %v548, %v997
      %v1006 = vmul.f32 %v553, %v997
      %v1007 = vmul.f32 %v558, %v997
      %v1008 = vmul.f32 %v563, %v997
      %v1009 = vmul.f32 %v568, %v997
      %v1010 = vmul.f32 %v573, %v997
      %v1011 = vmul.f32 %v578, %v997
      %v1012 = vmul.f32 %v583, %v997
      %v1013 = vmul.f32 %v588, %v997
      %v1014 = vadd.f32 %v981, %v998
      %v1015 = vadd.f32 %v982, %v999
      %v1016 = vadd.f32 %v983, %v1000
      %v1017 = vadd.f32 %v984, %v1001
      %v1018 = vadd.f32 %v985, %v1002
      %v1019 = vadd.f32 %v986, %v1003
      %v1020 = vadd.f32 %v987, %v1004
      %v1021 = vadd.f32 %v988, %v1005
      %v1022 = vadd.f32 %v989, %v1006
      %v1023 = vadd.f32 %v990, %v1007
      %v1024 = vadd.f32 %v991, %v1008
      %v1025 = vadd.f32 %v992, %v1009
      %v1026 = vadd.f32 %v993, %v1010
      %v1027 = vadd.f32 %v994, %v1011
      %v1028 = vadd.f32 %v995, %v1012
      %v1029 = vadd.f32 %v996, %v1013
      %v1030 = vperm.slane %v882, 1
      %v1031 = vmul.f32 %v753, %v1030
      %v1032 = vmul.f32 %v757, %v1030
      %v1033 = vmul.f32 %v761, %v1030
      %v1034 = vmul.f32 %v765, %v1030
      %v1035 = vmul.f32 %v769, %v1030
      %v1036 = vmul.f32 %v773, %v1030
      %v1037 = vmul.f32 %v777, %v1030
      %v1038 = vmul.f32 %v781, %v1030
      %v1039 = vmul.f32 %v785, %v1030
      %v1040 = vmul.f32 %v789, %v1030
      %v1041 = vmul.f32 %v793, %v1030
      %v1042 = vmul.f32 %v797, %v1030
      %v1043 = vmul.f32 %v801, %v1030
      %v1044 = vmul.f32 %v805, %v1030
      %v1045 = vmul.f32 %v809, %v1030
      %v1046 = vmul.f32 %v813, %v1030
      %v1047 = vadd.f32 %v1014, %v1031
      %v1048 = vadd.f32 %v1015, %v1032
      %v1049 = vadd.f32 %v1016, %v1033
      %v1050 = vadd.f32 %v1017, %v1034
      %v1051 = vadd.f32 %v1018, %v1035
      %v1052 = vadd.f32 %v1019, %v1036
      %v1053 = vadd.f32 %v1020, %v1037
      %v1054 = vadd.f32 %v1021, %v1038
      %v1055 = vadd.f32 %v1022, %v1039
      %v1056 = vadd.f32 %v1023, %v1040
      %v1057 = vadd.f32 %v1024, %v1041
      %v1058 = vadd.f32 %v1025, %v1042
      %v1059 = vadd.f32 %v1026, %v1043
      %v1060 = vadd.f32 %v1027, %v1044
      %v1061 = vadd.f32 %v1028, %v1045
      %v1062 = vadd.f32 %v1029, %v1046
      %v1063 = vadd.f32 %v1047, %v934
      %v1064 = vadd.f32 %v1048, %v937
      %v1065 = vadd.f32 %v1049, %v940
      %v1066 = vadd.f32 %v1050, %v943
      %v1067 = vadd.f32 %v1051, %v946
      %v1068 = vadd.f32 %v1052, %v949
      %v1069 = vadd.f32 %v1053, %v952
      %v1070 = vadd.f32 %v1054, %v955
      %v1071 = vadd.f32 %v1055, %v958
      %v1072 = vadd.f32 %v1056, %v961
      %v1073 = vadd.f32 %v1057, %v964
      %v1074 = vadd.f32 %v1058, %v967
      %v1075 = vadd.f32 %v1059, %v970
      %v1076 = vadd.f32 %v1060, %v973
      %v1077 = vadd.f32 %v1061, %v976
      %v1078 = vadd.f32 %v1062, %v979
      %v1079 = vtanh.pop %v1063
      %v1080 = vtanh.pop %v1064
      %v1081 = vtanh.pop %v1065
      %v1082 = vtanh.pop %v1066
      %v1083 = vtanh.pop %v1067
      %v1084 = vtanh.pop %v1068
      %v1085 = vtanh.pop %v1069
      %v1086 = vtanh.pop %v1070
      %v1087 = vtanh.pop %v1071
      %v1088 = vtanh.pop %v1072
      %v1089 = vtanh.pop %v1073
      %v1090 = vtanh.pop %v1074
      %v1091 = vtanh.pop %v1075
      %v1092 = vtanh.pop %v1076
      %v1093 = vtanh.pop %v1077
      %v1094 = vtanh.pop %v1078
      %1095 = vst [vmem:[#allocation11] sm:$0xff] %v1079
      %1096 = vst [vmem:[#allocation11 + $0x8] sm:$0xff] %v1080
      %1097 = vst [vmem:[#allocation11 + $0x10] sm:$0xff] %v1081
      %1098 = vst [vmem:[#allocation11 + $0x18] sm:$0xff] %v1082
      %1099 = vst [vmem:[#allocation11 + $0x20] sm:$0xff] %v1083
      %1100 = vst [vmem:[#allocation11 + $0x28] sm:$0xff] %v1084
      %1101 = vst [vmem:[#allocation11 + $0x30] sm:$0xff] %v1085
      %1102 = vst [vmem:[#allocation11 + $0x38] sm:$0xff] %v1086
      %1103 = vst [vmem:[#allocation11 + $0x40] sm:$0xff] %v1087
      %1104 = vst [vmem:[#allocation11 + $0x48] sm:$0xff] %v1088
      %1105 = vst [vmem:[#allocation11 + $0x50] sm:$0xff] %v1089
      %1106 = vst [vmem:[#allocation11 + $0x58] sm:$0xff] %v1090
      %1107 = vst [vmem:[#allocation11 + $0x60] sm:$0xff] %v1091
      %1108 = vst [vmem:[#allocation11 + $0x68] sm:$0xff] %v1092
      %1109 = vst [vmem:[#allocation11 + $0x70] sm:$0xff] %v1093
      %1110 = vst [vmem:[#allocation11 + $0x78] sm:$0xff] %v1094
    $region57: #{tpu_custom_call.1} parent=1 // pred_fallthru
      _
    // Predicated region
    $region58: #{tpu_custom_call.1} parent=1 // pred_check
      _
    $region59: #{tpu_custom_call.1} parent=1 // pred_check_branch
      %1112 = sbr.rel (0) target = $region61
    $region60: #{tpu_custom_call.1} parent=1 // pred_region
      %1114 = vsyncadd [#allocation4], 0
      %s1115 = sshll.u32 [#allocation11], 4
      %s1116 = int_to_ptr.vmem [resolvable:$true] %s1115
      %s1117 = sshll.u32 %s7, 4
      %s1118 = int_to_ptr.hbm [resolvable:$true] %s1117
      %1123 = dma.vmem_to_hbm [thread:$0]  %s1116, 2048, %s1118, [#allocation4], 128, 128, 8
    $region61: #{tpu_custom_call.1} parent=1 // pred_fallthru
      _
    // Predicated region
    $region62: #{tpu_custom_call.1} parent=1 // pred_check
      _
    $region63: #{tpu_custom_call.1} parent=1 // pred_check_branch
      %1125 = sbr.rel (0) target = $region65
    $region64: #{tpu_custom_call.1} parent=1 // pred_region
      %1127 = dma.done [#allocation4], 2048
    $region65: #{tpu_custom_call.1} parent=1 // pred_fallthru
      _
    %1128 = vsyncpa [#allocation3], 1
    %1129 = vsyncpa [#allocation6], 1
    %1130 = vsyncpa [#allocation9], 1
    %1131 = vsyncpa [#allocation4], 1

</llo_original>
